<compile_context>
chip_gen: v5e
topology: v5e:2x2
jax: 0.10.0
libtpu: 0.0.40
codegen_flags: <defaults>
</compile_context>

<pallas_src>
import functools

import jax
import jax.numpy as jnp
import numpy as np
from jax import lax
from jax.experimental import pallas as pl
from jax.experimental.pallas import tpu as pltpu

BN_EPS = 1e-5


# --------------------------------------------------------------------------- #
# Fused ResidualBlock kernel
# --------------------------------------------------------------------------- #
def _resblock_kernel(x_ref, w1_ref, w2_ref, g1_ref, b1_ref, g2_ref, b2_ref, fold_ref,
                     o_ref, xpad_ref, y1pad_ref, *, inv_count):
    """conv3x3 -> BN -> ReLU -> conv3x3 -> BN -> +x -> ReLU, fully fused in VMEM.

    x_ref      : (N, H/2, L) f32   unpadded input; L = 2*W*C lanes (row pairs packed)
    w*_ref     : (3L, L)     bf16  block-banded weights (3 padded super-rows -> 1 out super-row)
    g*/b*_ref  : (1, L)      f32   per-lane tiled BatchNorm affine parameters
    fold_ref   : (L, L)      f32   0/1 channel-fold matrix (per-channel sum + re-broadcast)
    o_ref      : (N*H/2, L)  f32   output
    xpad/y1pad : (N, H/2+2, L) bf16 VMEM scratches (one zero super-row border top & bottom)
    """
    n, h2, lanes = x_ref.shape
    m_rows = n * h2
    zero_sr = jnp.zeros((n, 1, lanes), jnp.bfloat16)

    def pad_into(dst_ref, packed_f32):
        # In-kernel zero padding of the H border (+ single bf16 cast of the conv LHS).
        dst_ref[:, 0:1, :] = zero_sr
        dst_ref[:, h2 + 1:h2 + 2, :] = zero_sr
        dst_ref[:, 1:h2 + 1, :] = packed_f32.astype(jnp.bfloat16)

    def conv3x3(pad_ref, wband_ref):
        # One MXU matmul per conv: LHS = 3 consecutive padded super-rows per output super-row.
        lhs = jnp.concatenate(
            [pad_ref[:, d:d + h2, :].reshape(m_rows, lanes) for d in range(3)], axis=-1)
        return jnp.dot(lhs, wband_ref[...], preferred_element_type=jnp.float32)

    def batchnorm(acc, g_ref, b_ref):
        # BatchNorm2d training-mode forward: two-pass batch stats (biased variance),
        # row-reduce first, then a tiny fold matmul produces the per-lane mean / var.
        s1 = jnp.sum(acc, axis=0, keepdims=True)                                   # (1, L)
        mean = jnp.dot(s1, fold_ref[...], preferred_element_type=jnp.float32) * inv_count
        d = acc - mean
        s2 = jnp.sum(d * d, axis=0, keepdims=True)                                 # (1, L)
        var = jnp.dot(s2, fold_ref[...], preferred_element_type=jnp.float32) * inv_count
        scale = g_ref[...] * lax.rsqrt(var + BN_EPS)                               # (1, L)
        return d * scale + b_ref[...]

    # ---- stage 1: pad -> conv -> BN -> ReLU (result stays in VMEM) -----------------
    pad_into(xpad_ref, x_ref[...])
    y1 = jnp.maximum(batchnorm(conv3x3(xpad_ref, w1_ref), g1_ref, b1_ref), 0.0)

    # ---- stage 2: re-pad -> conv -> BN -> +residual(f32) -> ReLU -------------------
    pad_into(y1pad_ref, y1.reshape(n, h2, lanes))
    y2 = batchnorm(conv3x3(y1pad_ref, w2_ref), g2_ref, b2_ref)
    o_ref[...] = jnp.maximum(y2 + x_ref[...].reshape(m_rows, lanes), 0.0)


# --------------------------------------------------------------------------- #
# Host-side parameter repacking
# --------------------------------------------------------------------------- #
def _band_weights(w_oihw, width):
    """Repack a PyTorch (Cout, Cin, 3, 3) conv weight into a (3*L_in, L_out) banded matrix.

    Output super-row r packs output rows {2r, 2r+1}; the matmul LHS for it is 3 consecutive
    padded super-rows = padded image rows {2r .. 2r+5}, where padded row p = input row p-2
    (two zero rows above and below the image).  x-direction taps and the 'same' zero padding
    are absorbed into the per-kernel-row band blocks.
    """
    w = np.asarray(w_oihw, dtype=np.float32)
    cout, cin, kh, kw = w.shape
    assert (kh, kw) == (3, 3)
    wc_in, wc_out = width * cin, width * cout
    rows = np.zeros((3, wc_in, wc_out), np.float32)       # per kernel-row x-band
    for dy in range(3):
        for dx in range(3):
            blk = w[:, :, dy, dx].T                       # (Cin, Cout)
            for xo in range(width):
                xi = xo + dx - 1                          # 'same' padding offset
                if 0 <= xi < width:
                    rows[dy, xi * cin:(xi + 1) * cin, xo * cout:(xo + 1) * cout] = blk
    z = np.zeros((wc_in, wc_out), np.float32)
    out_even = np.concatenate([z, rows[0], rows[1], rows[2], z, z], axis=0)   # output row 2r
    out_odd = np.concatenate([z, z, rows[0], rows[1], rows[2], z], axis=0)    # output row 2r+1
    return jnp.asarray(np.concatenate([out_even, out_odd], axis=1), dtype=jnp.bfloat16)


def _fold_matrix(channels, lanes):
    l = np.arange(lanes)
    return jnp.asarray((l[:, None] % channels) == (l[None, :] % channels), dtype=jnp.float32)


def _tile_lanes(v, lanes):
    v = np.asarray(v, dtype=np.float32).reshape(-1)
    return jnp.asarray(np.tile(v, lanes // v.size).reshape(1, lanes))


def prepare_params(w1_oihw, g1, b1, w2_oihw, g2, b2, width):
    channels = int(w1_oihw.shape[0])
    lanes = 2 * width * channels
    return {
        "w1": _band_weights(w1_oihw, width),
        "w2": _band_weights(w2_oihw, width),
        "g1": _tile_lanes(g1, lanes), "b1": _tile_lanes(b1, lanes),
        "g2": _tile_lanes(g2, lanes), "b2": _tile_lanes(b2, lanes),
        "fold": _fold_matrix(channels, lanes),
    }


# --------------------------------------------------------------------------- #
# Wrapper
# --------------------------------------------------------------------------- #
def residual_block_forward(x_nchw, params):
    """Forward pass of ResidualBlock(num_filters) on an NCHW input."""
    n, c, h, w = x_nchw.shape
    assert h % 2 == 0, "row-pair lane packing requires an even H"
    h2 = h // 2
    lanes = 2 * w * c

    # NCHW -> NHWC -> (N, H/2, 2*W*C): pairs of rows folded into the (128-wide) lane dim.
    x_packed = jnp.transpose(x_nchw, (0, 2, 3, 1)).reshape(n, h2, lanes).astype(jnp.float32)

    vmem = pl.BlockSpec(memory_space=pltpu.MemorySpace.VMEM)
    out2d = pl.pallas_call(
        functools.partial(_resblock_kernel, inv_count=1.0 / float(n * h * w)),
        out_shape=jax.ShapeDtypeStruct((n * h2, lanes), jnp.float32),
        in_specs=[vmem] * 8,
        out_specs=vmem,
        scratch_shapes=[pltpu.VMEM((n, h2 + 2, lanes), jnp.bfloat16),
                        pltpu.VMEM((n, h2 + 2, lanes), jnp.bfloat16)],
    )(x_packed, params["w1"], params["w2"],
      params["g1"], params["b1"], params["g2"], params["b2"], params["fold"])

    return jnp.transpose(out2d.reshape(n, h, w, c), (0, 3, 1, 2))   # back to NCHW


# --------------------------------------------------------------------------- #
# Pure-JAX reference (mirrors the kernel's precision policy: bf16 conv operands,
# f32 everywhere else; BatchNorm training-mode forward; f32 residual).
# --------------------------------------------------------------------------- #
def _ref_convbn(x_f32_nchw, w_oihw, gamma, beta):
    y = lax.conv_general_dilated(
        x_f32_nchw.astype(jnp.bfloat16), w_oihw.astype(jnp.bfloat16),
        window_strides=(1, 1), padding="SAME",
        dimension_numbers=("NCHW", "OIHW", "NCHW"),
        preferred_element_type=jnp.float32)
    mean = y.mean(axis=(0, 2, 3), keepdims=True)
    var = ((y - mean) ** 2).mean(axis=(0, 2, 3), keepdims=True)     # biased (training mode)
    return ((y - mean) * lax.rsqrt(var + BN_EPS)
            * gamma.reshape(1, -1, 1, 1) + beta.reshape(1, -1, 1, 1))


def _ref_residual_block(x, w1, g1, b1, w2, g2, b2):
    h1 = jax.nn.relu(_ref_convbn(x, w1, g1, b1))
    h2 = _ref_convbn(h1, w2, g2, b2)
    return jax.nn.relu(h2 + x)


if __name__ == "__main__":
    # Shapes implied by ResidualBlock(num_filters=4) on a 2x4x16x16 NCHW input.
    N, F, H, W = 2, 4, 16, 16

    key = jax.random.PRNGKey(0)
    kx, kw1, kw2, kg1, kb1, kg2, kb2 = jax.random.split(key, 7)

    x = jax.random.normal(kx, (N, F, H, W), dtype=jnp.float32)
    w1 = jax.random.normal(kw1, (F, F, 3, 3), dtype=jnp.float32) * 0.1
    w2 = jax.random.normal(kw2, (F, F, 3, 3), dtype=jnp.float32) * 0.1
    g1 = 1.0 + 0.1 * jax.random.normal(kg1, (F,), dtype=jnp.float32)
    b1 = 0.1 * jax.random.normal(kb1, (F,), dtype=jnp.float32)
    g2 = 1.0 + 0.1 * jax.random.normal(kg2, (F,), dtype=jnp.float32)
    b2 = 0.1 * jax.random.normal(kb2, (F,), dtype=jnp.float32)
    # TODO(synk): BatchNorm running_mean/running_var/num_batches_tracked buffer updates are
    # training-time state mutation, not part of the forward output; not modeled.

    params = prepare_params(w1, g1, b1, w2, g2, b2, W)

    out = jax.block_until_ready(residual_block_forward(x, params))
    ref = jax.block_until_ready(_ref_residual_block(x, w1, g1, b1, w2, g2, b2))

    assert out.shape == (N, F, H, W)
    err = float(jnp.max(jnp.abs(out - ref)))
    assert err < 5e-3, f"Pallas output mismatch vs JAX reference (max abs err {err})"

    print("KERNEL_OK")
</pallas_src>

<mosaic_0001>
module attributes {stable_mosaic.version = 11 : i64} {
  func.func @_resblock_kernel(%arg0: memref<2x8x128xf32, #tpu.memory_space<vmem>>, %arg1: memref<384x128xbf16, #tpu.memory_space<vmem>>, %arg2: memref<384x128xbf16, #tpu.memory_space<vmem>>, %arg3: memref<1x128xf32, #tpu.memory_space<vmem>>, %arg4: memref<1x128xf32, #tpu.memory_space<vmem>>, %arg5: memref<1x128xf32, #tpu.memory_space<vmem>>, %arg6: memref<1x128xf32, #tpu.memory_space<vmem>>, %arg7: memref<128x128xf32, #tpu.memory_space<vmem>>, %arg8: memref<16x128xf32, #tpu.memory_space<vmem>>, %arg9: memref<2x10x128xbf16, #tpu.memory_space<vmem>>, %arg10: memref<2x10x128xbf16, #tpu.memory_space<vmem>>) attributes {dimension_semantics = [], scalar_prefetch = 0 : i64, scratch_operands = 2 : i64, tpu.core_type = #tpu.core_type<tc>} {
    %cst = arith.constant 0.000000e+00 : bf16
    %0 = vector.broadcast %cst : bf16 to vector<2x1x128xbf16>
    %c0 = arith.constant 0 : index
    %c0_0 = arith.constant 0 : index
    %c0_1 = arith.constant 0 : index
    %1 = vector.load %arg0[%c0, %c0_0, %c0_1] : memref<2x8x128xf32, #tpu.memory_space<vmem>>, vector<2x8x128xf32>
    %c0_2 = arith.constant 0 : index
    %c0_3 = arith.constant 0 : index
    %c0_4 = arith.constant 0 : index
    %2 = vector.load %arg9[%c0_2, %c0_3, %c0_4] : memref<2x10x128xbf16, #tpu.memory_space<vmem>>, vector<2x1x128xbf16>
    tpu.vector_store %arg9[%c0_2, %c0_3, %c0_4], %0 {strides = array<i32>} : memref<2x10x128xbf16, #tpu.memory_space<vmem>>, vector<2x1x128xbf16>,
    %c0_5 = arith.constant 0 : index
    %c9 = arith.constant 9 : index
    %c0_6 = arith.constant 0 : index
    %3 = vector.load %arg9[%c0_5, %c9, %c0_6] : memref<2x10x128xbf16, #tpu.memory_space<vmem>>, vector<2x1x128xbf16>
    tpu.vector_store %arg9[%c0_5, %c9, %c0_6], %0 {strides = array<i32>} : memref<2x10x128xbf16, #tpu.memory_space<vmem>>, vector<2x1x128xbf16>,
    %4 = arith.truncf %1 : vector<2x8x128xf32> to vector<2x8x128xbf16>
    %c0_7 = arith.constant 0 : index
    %c1 = arith.constant 1 : index
    %c0_8 = arith.constant 0 : index
    %5 = vector.load %arg9[%c0_7, %c1, %c0_8] : memref<2x10x128xbf16, #tpu.memory_space<vmem>>, vector<2x8x128xbf16>
    tpu.vector_store %arg9[%c0_7, %c1, %c0_8], %4 {strides = array<i32>} : memref<2x10x128xbf16, #tpu.memory_space<vmem>>, vector<2x8x128xbf16>,
    %c0_9 = arith.constant 0 : index
    %c0_10 = arith.constant 0 : index
    %c0_11 = arith.constant 0 : index
    %6 = vector.load %arg9[%c0_9, %c0_10, %c0_11] : memref<2x10x128xbf16, #tpu.memory_space<vmem>>, vector<2x8x128xbf16>
    %7 = vector.shape_cast %6 : vector<2x8x128xbf16> to vector<16x128xbf16>
    %c0_12 = arith.constant 0 : index
    %c1_13 = arith.constant 1 : index
    %c0_14 = arith.constant 0 : index
    %8 = vector.load %arg9[%c0_12, %c1_13, %c0_14] : memref<2x10x128xbf16, #tpu.memory_space<vmem>>, vector<2x8x128xbf16>
    %9 = vector.shape_cast %8 : vector<2x8x128xbf16> to vector<16x128xbf16>
    %c0_15 = arith.constant 0 : index
    %c2 = arith.constant 2 : index
    %c0_16 = arith.constant 0 : index
    %10 = vector.load %arg9[%c0_15, %c2, %c0_16] : memref<2x10x128xbf16, #tpu.memory_space<vmem>>, vector<2x8x128xbf16>
    %11 = vector.shape_cast %10 : vector<2x8x128xbf16> to vector<16x128xbf16>
    %12 = tpu.concatenate %7, %9, %11 in 1 : vector<16x128xbf16>, vector<16x128xbf16>, vector<16x128xbf16> -> vector<16x384xbf16>
    %c0_17 = arith.constant 0 : index
    %c0_18 = arith.constant 0 : index
    %13 = vector.load %arg1[%c0_17, %c0_18] : memref<384x128xbf16, #tpu.memory_space<vmem>>, vector<384x128xbf16>
    %cst_19 = arith.constant dense<0.000000e+00> : vector<16x128xf32>
    %14 = tpu.matmul %12, %13, %cst_19 {dimension_numbers = #tpu.dot_dimension_numbers<[1], [0], [0], [1], [0, 0, 1, 1], [], []>} : vector<16x384xbf16>, vector<384x128xbf16>, vector<16x128xf32> -> vector<16x128xf32>
    %cst_20 = arith.constant dense<0.000000e+00> : vector<128xf32>
    %15 = vector.multi_reduction <add>, %14, %cst_20 [0] : vector<16x128xf32> to vector<128xf32>
    %16 = vector.shape_cast %15 : vector<128xf32> to vector<1x128xf32>
    %c0_21 = arith.constant 0 : index
    %c0_22 = arith.constant 0 : index
    %17 = vector.load %arg7[%c0_21, %c0_22] : memref<128x128xf32, #tpu.memory_space<vmem>>, vector<128x128xf32>
    %cst_23 = arith.constant dense<0.000000e+00> : vector<1x128xf32>
    %18 = tpu.matmul %16, %17, %cst_23 {dimension_numbers = #tpu.dot_dimension_numbers<[1], [0], [0], [1], [0, 0, 1, 1], [], []>} : vector<1x128xf32>, vector<128x128xf32>, vector<1x128xf32> -> vector<1x128xf32>
    %cst_24 = arith.constant 0.001953125 : f32
    %19 = vector.broadcast %cst_24 : f32 to vector<1x128xf32>
    %20 = arith.mulf %18, %19 : vector<1x128xf32>
    %21 = vector.broadcast %20 : vector<1x128xf32> to vector<16x128xf32>
    %22 = arith.subf %14, %21 : vector<16x128xf32>
    %23 = arith.mulf %22, %22 : vector<16x128xf32>
    %cst_25 = arith.constant dense<0.000000e+00> : vector<128xf32>
    %24 = vector.multi_reduction <add>, %23, %cst_25 [0] : vector<16x128xf32> to vector<128xf32>
    %25 = vector.shape_cast %24 : vector<128xf32> to vector<1x128xf32>
    %c0_26 = arith.constant 0 : index
    %c0_27 = arith.constant 0 : index
    %26 = vector.load %arg7[%c0_26, %c0_27] : memref<128x128xf32, #tpu.memory_space<vmem>>, vector<128x128xf32>
    %cst_28 = arith.constant dense<0.000000e+00> : vector<1x128xf32>
    %27 = tpu.matmul %25, %26, %cst_28 {dimension_numbers = #tpu.dot_dimension_numbers<[1], [0], [0], [1], [0, 0, 1, 1], [], []>} : vector<1x128xf32>, vector<128x128xf32>, vector<1x128xf32> -> vector<1x128xf32>
    %cst_29 = arith.constant 0.001953125 : f32
    %28 = vector.broadcast %cst_29 : f32 to vector<1x128xf32>
    %29 = arith.mulf %27, %28 : vector<1x128xf32>
    %c0_30 = arith.constant 0 : index
    %c0_31 = arith.constant 0 : index
    %30 = vector.load %arg3[%c0_30, %c0_31] : memref<1x128xf32, #tpu.memory_space<vmem>>, vector<1x128xf32>
    %cst_32 = arith.constant 9.99999974E-6 : f32
    %31 = vector.broadcast %cst_32 : f32 to vector<1x128xf32>
    %32 = arith.addf %29, %31 : vector<1x128xf32>
    %33 = math.rsqrt %32 : vector<1x128xf32>
    %34 = arith.mulf %30, %33 : vector<1x128xf32>
    %35 = vector.broadcast %34 : vector<1x128xf32> to vector<16x128xf32>
    %36 = arith.mulf %22, %35 : vector<16x128xf32>
    %c0_33 = arith.constant 0 : index
    %c0_34 = arith.constant 0 : index
    %37 = vector.load %arg4[%c0_33, %c0_34] : memref<1x128xf32, #tpu.memory_space<vmem>>, vector<1x128xf32>
    %38 = vector.broadcast %37 : vector<1x128xf32> to vector<16x128xf32>
    %39 = arith.addf %36, %38 : vector<16x128xf32>
    %cst_35 = arith.constant 0.000000e+00 : f32
    %40 = vector.broadcast %cst_35 : f32 to vector<16x128xf32>
    %41 = arith.maximumf %39, %40 : vector<16x128xf32>
    %42 = vector.shape_cast %41 : vector<16x128xf32> to vector<2x8x128xf32>
    %c0_36 = arith.constant 0 : index
    %c0_37 = arith.constant 0 : index
    %c0_38 = arith.constant 0 : index
    %43 = vector.load %arg10[%c0_36, %c0_37, %c0_38] : memref<2x10x128xbf16, #tpu.memory_space<vmem>>, vector<2x1x128xbf16>
    tpu.vector_store %arg10[%c0_36, %c0_37, %c0_38], %0 {strides = array<i32>} : memref<2x10x128xbf16, #tpu.memory_space<vmem>>, vector<2x1x128xbf16>,
    %c0_39 = arith.constant 0 : index
    %c9_40 = arith.constant 9 : index
    %c0_41 = arith.constant 0 : index
    %44 = vector.load %arg10[%c0_39, %c9_40, %c0_41] : memref<2x10x128xbf16, #tpu.memory_space<vmem>>, vector<2x1x128xbf16>
    tpu.vector_store %arg10[%c0_39, %c9_40, %c0_41], %0 {strides = array<i32>} : memref<2x10x128xbf16, #tpu.memory_space<vmem>>, vector<2x1x128xbf16>,
    %45 = arith.truncf %42 : vector<2x8x128xf32> to vector<2x8x128xbf16>
    %c0_42 = arith.constant 0 : index
    %c1_43 = arith.constant 1 : index
    %c0_44 = arith.constant 0 : index
    %46 = vector.load %arg10[%c0_42, %c1_43, %c0_44] : memref<2x10x128xbf16, #tpu.memory_space<vmem>>, vector<2x8x128xbf16>
    tpu.vector_store %arg10[%c0_42, %c1_43, %c0_44], %45 {strides = array<i32>} : memref<2x10x128xbf16, #tpu.memory_space<vmem>>, vector<2x8x128xbf16>,
    %c0_45 = arith.constant 0 : index
    %c0_46 = arith.constant 0 : index
    %c0_47 = arith.constant 0 : index
    %47 = vector.load %arg10[%c0_45, %c0_46, %c0_47] : memref<2x10x128xbf16, #tpu.memory_space<vmem>>, vector<2x8x128xbf16>
    %48 = vector.shape_cast %47 : vector<2x8x128xbf16> to vector<16x128xbf16>
    %c0_48 = arith.constant 0 : index
    %c1_49 = arith.constant 1 : index
    %c0_50 = arith.constant 0 : index
    %49 = vector.load %arg10[%c0_48, %c1_49, %c0_50] : memref<2x10x128xbf16, #tpu.memory_space<vmem>>, vector<2x8x128xbf16>
    %50 = vector.shape_cast %49 : vector<2x8x128xbf16> to vector<16x128xbf16>
    %c0_51 = arith.constant 0 : index
    %c2_52 = arith.constant 2 : index
    %c0_53 = arith.constant 0 : index
    %51 = vector.load %arg10[%c0_51, %c2_52, %c0_53] : memref<2x10x128xbf16, #tpu.memory_space<vmem>>, vector<2x8x128xbf16>
    %52 = vector.shape_cast %51 : vector<2x8x128xbf16> to vector<16x128xbf16>
    %53 = tpu.concatenate %48, %50, %52 in 1 : vector<16x128xbf16>, vector<16x128xbf16>, vector<16x128xbf16> -> vector<16x384xbf16>
    %c0_54 = arith.constant 0 : index
    %c0_55 = arith.constant 0 : index
    %54 = vector.load %arg2[%c0_54, %c0_55] : memref<384x128xbf16, #tpu.memory_space<vmem>>, vector<384x128xbf16>
    %cst_56 = arith.constant dense<0.000000e+00> : vector<16x128xf32>
    %55 = tpu.matmul %53, %54, %cst_56 {dimension_numbers = #tpu.dot_dimension_numbers<[1], [0], [0], [1], [0, 0, 1, 1], [], []>} : vector<16x384xbf16>, vector<384x128xbf16>, vector<16x128xf32> -> vector<16x128xf32>
    %cst_57 = arith.constant dense<0.000000e+00> : vector<128xf32>
    %56 = vector.multi_reduction <add>, %55, %cst_57 [0] : vector<16x128xf32> to vector<128xf32>
    %57 = vector.shape_cast %56 : vector<128xf32> to vector<1x128xf32>
    %c0_58 = arith.constant 0 : index
    %c0_59 = arith.constant 0 : index
    %58 = vector.load %arg7[%c0_58, %c0_59] : memref<128x128xf32, #tpu.memory_space<vmem>>, vector<128x128xf32>
    %cst_60 = arith.constant dense<0.000000e+00> : vector<1x128xf32>
    %59 = tpu.matmul %57, %58, %cst_60 {dimension_numbers = #tpu.dot_dimension_numbers<[1], [0], [0], [1], [0, 0, 1, 1], [], []>} : vector<1x128xf32>, vector<128x128xf32>, vector<1x128xf32> -> vector<1x128xf32>
    %cst_61 = arith.constant 0.001953125 : f32
    %60 = vector.broadcast %cst_61 : f32 to vector<1x128xf32>
    %61 = arith.mulf %59, %60 : vector<1x128xf32>
    %62 = vector.broadcast %61 : vector<1x128xf32> to vector<16x128xf32>
    %63 = arith.subf %55, %62 : vector<16x128xf32>
    %64 = arith.mulf %63, %63 : vector<16x128xf32>
    %cst_62 = arith.constant dense<0.000000e+00> : vector<128xf32>
    %65 = vector.multi_reduction <add>, %64, %cst_62 [0] : vector<16x128xf32> to vector<128xf32>
    %66 = vector.shape_cast %65 : vector<128xf32> to vector<1x128xf32>
    %c0_63 = arith.constant 0 : index
    %c0_64 = arith.constant 0 : index
    %67 = vector.load %arg7[%c0_63, %c0_64] : memref<128x128xf32, #tpu.memory_space<vmem>>, vector<128x128xf32>
    %cst_65 = arith.constant dense<0.000000e+00> : vector<1x128xf32>
    %68 = tpu.matmul %66, %67, %cst_65 {dimension_numbers = #tpu.dot_dimension_numbers<[1], [0], [0], [1], [0, 0, 1, 1], [], []>} : vector<1x128xf32>, vector<128x128xf32>, vector<1x128xf32> -> vector<1x128xf32>
    %cst_66 = arith.constant 0.001953125 : f32
    %69 = vector.broadcast %cst_66 : f32 to vector<1x128xf32>
    %70 = arith.mulf %68, %69 : vector<1x128xf32>
    %c0_67 = arith.constant 0 : index
    %c0_68 = arith.constant 0 : index
    %71 = vector.load %arg5[%c0_67, %c0_68] : memref<1x128xf32, #tpu.memory_space<vmem>>, vector<1x128xf32>
    %cst_69 = arith.constant 9.99999974E-6 : f32
    %72 = vector.broadcast %cst_69 : f32 to vector<1x128xf32>
    %73 = arith.addf %70, %72 : vector<1x128xf32>
    %74 = math.rsqrt %73 : vector<1x128xf32>
    %75 = arith.mulf %71, %74 : vector<1x128xf32>
    %76 = vector.broadcast %75 : vector<1x128xf32> to vector<16x128xf32>
    %77 = arith.mulf %63, %76 : vector<16x128xf32>
    %c0_70 = arith.constant 0 : index
    %c0_71 = arith.constant 0 : index
    %78 = vector.load %arg6[%c0_70, %c0_71] : memref<1x128xf32, #tpu.memory_space<vmem>>, vector<1x128xf32>
    %79 = vector.broadcast %78 : vector<1x128xf32> to vector<16x128xf32>
    %80 = arith.addf %77, %79 : vector<16x128xf32>
    %c0_72 = arith.constant 0 : index
    %c0_73 = arith.constant 0 : index
    %c0_74 = arith.constant 0 : index
    %81 = vector.load %arg0[%c0_72, %c0_73, %c0_74] : memref<2x8x128xf32, #tpu.memory_space<vmem>>, vector<2x8x128xf32>
    %82 = vector.shape_cast %81 : vector<2x8x128xf32> to vector<16x128xf32>
    %83 = arith.addf %80, %82 : vector<16x128xf32>
    %cst_75 = arith.constant 0.000000e+00 : f32
    %84 = vector.broadcast %cst_75 : f32 to vector<16x128xf32>
    %85 = arith.maximumf %83, %84 : vector<16x128xf32>
    %c0_76 = arith.constant 0 : index
    %c0_77 = arith.constant 0 : index
    %86 = vector.load %arg8[%c0_76, %c0_77] : memref<16x128xf32, #tpu.memory_space<vmem>>, vector<16x128xf32>
    tpu.vector_store %arg8[%c0_76, %c0_77], %85 {strides = array<i32>} : memref<16x128xf32, #tpu.memory_space<vmem>>, vector<16x128xf32>,
    return
  }
}

</mosaic_0001>

<llo_original>
// kernel: tpu_custom_call.1
$region0: #{tpu_custom_call.1}
  #allocation0 [shape = 'u32[]', space=smem, size = 0x4, offset = 0x4, fixed_abs, tag = 'smem constant byte address 0x4 - core index']
  #allocation1 [shape = 'u32[72,128]{1,0:T(1,128)}', space=vmem, size = 0x9000, scoped, tag = 'internal scratch']
  #allocation2 [shape = 'bf16[2,10,128]{2,1,0:T(8,128)(2,1)}', space=vmem, size = 0x2000, scoped, tag = 'scratch operand']
  #allocation3 [shape = 'bf16[2,10,128]{2,1,0:T(8,128)(2,1)}', space=vmem, size = 0x2000, scoped, tag = 'scratch operand']
  %s0 = inlined_call_operand.hbm [shape: f32[2,8,128], index: 0, kind: input, shape index: {}]
  %s1 = inlined_call_operand.hbm [shape: bf16[384,128], index: 1, kind: input, shape index: {}]
  %s2 = inlined_call_operand.hbm [shape: bf16[384,128], index: 2, kind: input, shape index: {}]
  %s3 = inlined_call_operand.vmem [shape: f32[1,128], index: 3, kind: input, shape index: {}]
  %s4 = inlined_call_operand.vmem [shape: f32[1,128], index: 4, kind: input, shape index: {}]
  %s5 = inlined_call_operand.vmem [shape: f32[1,128], index: 5, kind: input, shape index: {}]
  %s6 = inlined_call_operand.vmem [shape: f32[1,128], index: 6, kind: input, shape index: {}]
  %s7 = inlined_call_operand.hbm [shape: f32[128,128], index: 7, kind: input, shape index: {}]
  %s8 = inlined_call_operand.hbm [shape: f32[16,128], index: 8, kind: output, shape index: {}]
  %s9 = sld [smem:[#allocation0]]
  $region58: #{tpu_custom_call.1} parent=0
    _
  %s11 = ssub.s32 1, %s9
  %s12 = scalar_select 0, %s11, %s9
  $region1: #{tpu_custom_call.1} parent=0
    #allocation4 [shape = 'u8[8192]{0}', space=vmem, size = 0x2000, scoped, tag = 'input window, operand 0, single buffered']
    #allocation5 [shape = 's32[1]{0}', space=sflag, size = 0x4, scoped, tag = 'scoped memory for tpu_custom_call.1']
    #allocation6 [shape = 's32[1]{0}', space=sflag, size = 0x4, scoped, tag = 'scoped memory for tpu_custom_call.1']
    #allocation7 [shape = 'u8[98304]{0}', space=vmem, size = 0x18000, scoped, tag = 'input window, operand 1, single buffered']
    #allocation8 [shape = 's32[1]{0}', space=sflag, size = 0x4, scoped, tag = 'scoped memory for tpu_custom_call.1']
    #allocation9 [shape = 'u8[98304]{0}', space=vmem, size = 0x18000, scoped, tag = 'input window, operand 2, single buffered']
    #allocation10 [shape = 'u8[65536]{0}', space=vmem, size = 0x10000, scoped, tag = 'input window, operand 7, single buffered']
    #allocation11 [shape = 's32[1]{0}', space=sflag, size = 0x4, scoped, tag = 'scoped memory for tpu_custom_call.1']
    #allocation12 [shape = 'u8[8192]{0}', space=vmem, size = 0x2000, scoped, tag = 'output window, operand 0, single buffered']
    %13 = vsyncpa [#allocation5], 0
    %14 = vsyncpa [#allocation8], 0
    %15 = vsyncpa [#allocation11], 0
    %16 = vsyncpa [#allocation6], 0
    // Predicated region
    $region2: #{tpu_custom_call.1} parent=1 // pred_check
      _
    $region3: #{tpu_custom_call.1} parent=1 // pred_check_branch
      %18 = sbr.rel (0) target = $region5
    $region4: #{tpu_custom_call.1} parent=1 // pred_region
      %20 = vsyncadd [#allocation5], 0
      %s21 = sshll.u32 %s0, 4
      %s22 = int_to_ptr.hbm [resolvable:$true] %s21
      %s23 = sshll.u32 [#allocation4], 4
      %s24 = int_to_ptr.vmem [resolvable:$true] %s23
      %29 = dma.hbm_to_vmem [thread:$0]  %s22, 256, %s24, [#allocation5], 128, 128, 8
    $region5: #{tpu_custom_call.1} parent=1 // pred_fallthru
      _
    // Predicated region
    $region6: #{tpu_custom_call.1} parent=1 // pred_check
      _
    $region7: #{tpu_custom_call.1} parent=1 // pred_check_branch
      %31 = sbr.rel (0) target = $region9
    $region8: #{tpu_custom_call.1} parent=1 // pred_region
      %33 = vsyncadd [#allocation8], 0
      %s34 = sshll.u32 %s1, 4
      %s35 = int_to_ptr.hbm [resolvable:$true] %s34
      %s36 = sshll.u32 [#allocation7], 4
      %s37 = int_to_ptr.vmem [resolvable:$true] %s36
      %42 = dma.hbm_to_vmem [thread:$0]  %s35, 3072, %s37, [#allocation8], 64, 64, 4
    $region9: #{tpu_custom_call.1} parent=1 // pred_fallthru
      _
    // Predicated region
    $region10: #{tpu_custom_call.1} parent=1 // pred_check
      _
    $region11: #{tpu_custom_call.1} parent=1 // pred_check_branch
      %44 = sbr.rel (0) target = $region13
    $region12: #{tpu_custom_call.1} parent=1 // pred_region
      %46 = vsyncadd [#allocation8], 0
      %s47 = sshll.u32 %s2, 4
      %s48 = int_to_ptr.hbm [resolvable:$true] %s47
      %s49 = sshll.u32 [#allocation9], 4
      %s50 = int_to_ptr.vmem [resolvable:$true] %s49
      %55 = dma.hbm_to_vmem [thread:$0]  %s48, 3072, %s50, [#allocation8], 64, 64, 4
    $region13: #{tpu_custom_call.1} parent=1 // pred_fallthru
      _
    // Predicated region
    $region14: #{tpu_custom_call.1} parent=1 // pred_check
      _
    $region15: #{tpu_custom_call.1} parent=1 // pred_check_branch
      %57 = sbr.rel (0) target = $region17
    $region16: #{tpu_custom_call.1} parent=1 // pred_region
      _
    $region17: #{tpu_custom_call.1} parent=1 // pred_fallthru
      _
    // Predicated region
    $region18: #{tpu_custom_call.1} parent=1 // pred_check
      _
    $region19: #{tpu_custom_call.1} parent=1 // pred_check_branch
      %59 = sbr.rel (0) target = $region21
    $region20: #{tpu_custom_call.1} parent=1 // pred_region
      _
    $region21: #{tpu_custom_call.1} parent=1 // pred_fallthru
      _
    // Predicated region
    $region22: #{tpu_custom_call.1} parent=1 // pred_check
      _
    $region23: #{tpu_custom_call.1} parent=1 // pred_check_branch
      %61 = sbr.rel (0) target = $region25
    $region24: #{tpu_custom_call.1} parent=1 // pred_region
      _
    $region25: #{tpu_custom_call.1} parent=1 // pred_fallthru
      _
    // Predicated region
    $region26: #{tpu_custom_call.1} parent=1 // pred_check
      _
    $region27: #{tpu_custom_call.1} parent=1 // pred_check_branch
      %63 = sbr.rel (0) target = $region29
    $region28: #{tpu_custom_call.1} parent=1 // pred_region
      _
    $region29: #{tpu_custom_call.1} parent=1 // pred_fallthru
      _
    // Predicated region
    $region30: #{tpu_custom_call.1} parent=1 // pred_check
      _
    $region31: #{tpu_custom_call.1} parent=1 // pred_check_branch
      %65 = sbr.rel (0) target = $region33
    $region32: #{tpu_custom_call.1} parent=1 // pred_region
      %67 = vsyncadd [#allocation11], 0
      %s68 = sshll.u32 %s7, 4
      %s69 = int_to_ptr.hbm [resolvable:$true] %s68
      %s70 = sshll.u32 [#allocation10], 4
      %s71 = int_to_ptr.vmem [resolvable:$true] %s70
      %76 = dma.hbm_to_vmem [thread:$0]  %s69, 2048, %s71, [#allocation11], 128, 128, 8
    $region33: #{tpu_custom_call.1} parent=1 // pred_fallthru
      _
    // Predicated region
    $region34: #{tpu_custom_call.1} parent=1 // pred_check
      _
    $region35: #{tpu_custom_call.1} parent=1 // pred_check_branch
      %78 = sbr.rel (0) target = $region37
    $region36: #{tpu_custom_call.1} parent=1 // pred_region
      %80 = dma.done [#allocation5], 256
    $region37: #{tpu_custom_call.1} parent=1 // pred_fallthru
      _
    // Predicated region
    $region38: #{tpu_custom_call.1} parent=1 // pred_check
      _
    $region39: #{tpu_custom_call.1} parent=1 // pred_check_branch
      %82 = sbr.rel (0) target = $region41
    $region40: #{tpu_custom_call.1} parent=1 // pred_region
      %84 = dma.done [#allocation8], 3072
    $region41: #{tpu_custom_call.1} parent=1 // pred_fallthru
      _
    // Predicated region
    $region42: #{tpu_custom_call.1} parent=1 // pred_check
      _
    $region43: #{tpu_custom_call.1} parent=1 // pred_check_branch
      %86 = sbr.rel (0) target = $region45
    $region44: #{tpu_custom_call.1} parent=1 // pred_region
      %88 = dma.done [#allocation8], 3072
    $region45: #{tpu_custom_call.1} parent=1 // pred_fallthru
      _
    // Predicated region
    $region46: #{tpu_custom_call.1} parent=1 // pred_check
      _
    $region47: #{tpu_custom_call.1} parent=1 // pred_check_branch
      %90 = sbr.rel (0) target = $region49
    $region48: #{tpu_custom_call.1} parent=1 // pred_region
      %92 = dma.done [#allocation11], 2048
    $region49: #{tpu_custom_call.1} parent=1 // pred_fallthru
      _
    %v94 = vld [vmem:[#allocation4] sm:$0xff]
    %v95 = vld [vmem:[#allocation4 + $0x8] sm:$0xff]
    %vm96 = vcmask 1040384
    %vm97 = vsmask.f32 256
    %vm98 = vmand %vm96, %vm97
    %v99 = vld [vmem:[#allocation2] sm:$0x1]
    %v100 = vsel %vm98, 0, %v99
    %101 = vst [vmem:[#allocation2] sm:$0x1] %v100
    %v102 = vld [vmem:[#allocation2 + $0x8] sm:$0x1]
    %v103 = vsel %vm98, 0, %v102
    %104 = vst [vmem:[#allocation2 + $0x8] sm:$0x1] %v103
    %vm105 = vsmask.f32 7938
    %vm106 = vmand %vm96, %vm105
    %v107 = vld [vmem:[#allocation2 + $0x4] sm:$0x1]
    %v108 = vsel %vm106, 0, %v107
    %109 = vst [vmem:[#allocation2 + $0x4] sm:$0x1] %v108
    %v110 = vld [vmem:[#allocation2 + $0xc] sm:$0x1]
    %v111 = vsel %vm106, 0, %v110
    %112 = vst [vmem:[#allocation2 + $0xc] sm:$0x1] %v111
    %v113 = vpack.c.bf16 %v94, %v94
    %v114 = vpack.c.bf16 %v95, %v95
    %v116 = vshrl.u32 %v113, 16
    %v118 = vrot.slane %v116, 7
    %v119 = vshll.u32 %v113, 16
    %v121 = vor.u32 %v118, %v119
    %v122 = vrot.slane %v118, 4
    %v124 = vshrl.u32 %v114, 16
    %v126 = vrot.slane %v124, 7
    %v127 = vshll.u32 %v114, 16
    %v129 = vor.u32 %v126, %v127
    %v130 = vrot.slane %v126, 4
    %vm135 = vcmask 1043456
    %vm136 = vmand %vm135, %vm105
    %v137 = vld [vmem:[#allocation2] sm:$0xf]
    %v138 = vsel %vm136, %v121, %v137
    %139 = vst [vmem:[#allocation2] sm:$0xf] %v138
    %v140 = vld [vmem:[#allocation2 + $0x4] sm:$0x1]
    %v141 = vsel %vm98, %v122, %v140
    %142 = vst [vmem:[#allocation2 + $0x4] sm:$0x1] %v141
    %v143 = vld [vmem:[#allocation2 + $0x8] sm:$0xf]
    %v144 = vsel %vm136, %v129, %v143
    %145 = vst [vmem:[#allocation2 + $0x8] sm:$0xf] %v144
    %v146 = vld [vmem:[#allocation2 + $0xc] sm:$0x1]
    %v147 = vsel %vm98, %v130, %v146
    %148 = vst [vmem:[#allocation2 + $0xc] sm:$0x1] %v147
    %v149 = vld [vmem:[#allocation2] sm:$0xf]
    %v150 = vld [vmem:[#allocation2 + $0x8] sm:$0xf]
    %v151 = vld [vmem:[#allocation2 + $0x4] sm:$0x1]
    %v152 = vld [vmem:[#allocation2 + $0xc] sm:$0x1]
    %vm153 = vsmask.f32 3328
    %vm154 = vsmask.f32 7440
    %vm155 = vmor %vm153, %vm154
    %v157 = vshrl.u32 %v149, 16
    %v159 = vrot.slane %v157, 4
    %v160 = vshll.u32 %v149, 16
    %v162 = vrot.slane %v160, 5
    %v163 = vor.u32 %v159, %v162
    %v164 = vrot.slane %v163, 4
    %v166 = vshll.u32 %v151, 16
    %v168 = vrot.slane %v166, 5
    %v169 = vsel %vm155, %v164, %v168
    %v171 = vshrl.u32 %v150, 16
    %v173 = vrot.slane %v171, 4
    %v174 = vshll.u32 %v150, 16
    %v176 = vrot.slane %v174, 5
    %v177 = vor.u32 %v173, %v176
    %v178 = vrot.slane %v177, 4
    %v180 = vshll.u32 %v152, 16
    %v182 = vrot.slane %v180, 5
    %v183 = vsel %vm155, %v178, %v182
    %v184 = vld [vmem:[#allocation2] sm:$0xe]
    %v185 = vld [vmem:[#allocation2 + $0x8] sm:$0xe]
    %vm190 = vcmask 1042432
    %vm191 = vcmask 1046532
    %vm192 = vmor %vm190, %vm191
    %v193 = vrot.slane %v184, 5
    %v194 = vrot.slane %v193, 4
    %v195 = vrot.slane %v151, 5
    %v196 = vsel %vm192, %v194, %v195
    %v197 = vrot.slane %v185, 5
    %v198 = vrot.slane %v197, 4
    %v199 = vrot.slane %v152, 5
    %v200 = vsel %vm192, %v198, %v199
    %v203 = vunpack.c.l.b16 %v149
    %v204 = vunpack.c.l.b16 %v150
    %v205 = vpack.c.b16 %v204, %v203
    %v207 = vunpack.c.l.b16 %v169
    %v208 = vunpack.c.l.b16 %v183
    %v209 = vpack.c.b16 %v208, %v207
    %v211 = vunpack.c.l.b16 %v196
    %v212 = vunpack.c.l.b16 %v200
    %v213 = vpack.c.b16 %v212, %v211
    %v215 = vld [vmem:[#allocation7] sm:$0xf]
    %v216 = vld [vmem:[#allocation7 + $0x4] sm:$0xf]
    %v217 = vld [vmem:[#allocation7 + $0x8] sm:$0xf]
    %v218 = vld [vmem:[#allocation7 + $0xc] sm:$0xf]
    %v219 = vld [vmem:[#allocation7 + $0x10] sm:$0xf]
    %v220 = vld [vmem:[#allocation7 + $0x14] sm:$0xf]
    %v221 = vld [vmem:[#allocation7 + $0x18] sm:$0xf]
    %v222 = vld [vmem:[#allocation7 + $0x1c] sm:$0xf]
    %v223 = vld [vmem:[#allocation7 + $0x20] sm:$0xf]
    %v224 = vld [vmem:[#allocation7 + $0x24] sm:$0xf]
    %v225 = vld [vmem:[#allocation7 + $0x28] sm:$0xf]
    %v226 = vld [vmem:[#allocation7 + $0x2c] sm:$0xf]
    %v227 = vld [vmem:[#allocation7 + $0x30] sm:$0xf]
    %v228 = vld [vmem:[#allocation7 + $0x34] sm:$0xf]
    %v229 = vld [vmem:[#allocation7 + $0x38] sm:$0xf]
    %v230 = vld [vmem:[#allocation7 + $0x3c] sm:$0xf]
    %v231 = vld [vmem:[#allocation7 + $0x40] sm:$0xf]
    %v232 = vld [vmem:[#allocation7 + $0x44] sm:$0xf]
    %v233 = vld [vmem:[#allocation7 + $0x48] sm:$0xf]
    %v234 = vld [vmem:[#allocation7 + $0x4c] sm:$0xf]
    %v235 = vld [vmem:[#allocation7 + $0x50] sm:$0xf]
    %v236 = vld [vmem:[#allocation7 + $0x54] sm:$0xf]
    %v237 = vld [vmem:[#allocation7 + $0x58] sm:$0xf]
    %v238 = vld [vmem:[#allocation7 + $0x5c] sm:$0xf]
    %v239 = vld [vmem:[#allocation7 + $0x60] sm:$0xf]
    %v240 = vld [vmem:[#allocation7 + $0x64] sm:$0xf]
    %v241 = vld [vmem:[#allocation7 + $0x68] sm:$0xf]
    %v242 = vld [vmem:[#allocation7 + $0x6c] sm:$0xf]
    %v243 = vld [vmem:[#allocation7 + $0x70] sm:$0xf]
    %v244 = vld [vmem:[#allocation7 + $0x74] sm:$0xf]
    %v245 = vld [vmem:[#allocation7 + $0x78] sm:$0xf]
    %v246 = vld [vmem:[#allocation7 + $0x7c] sm:$0xf]
    %v247 = vld [vmem:[#allocation7 + $0x80] sm:$0xf]
    %v248 = vld [vmem:[#allocation7 + $0x84] sm:$0xf]
    %v249 = vld [vmem:[#allocation7 + $0x88] sm:$0xf]
    %v250 = vld [vmem:[#allocation7 + $0x8c] sm:$0xf]
    %v251 = vld [vmem:[#allocation7 + $0x90] sm:$0xf]
    %v252 = vld [vmem:[#allocation7 + $0x94] sm:$0xf]
    %v253 = vld [vmem:[#allocation7 + $0x98] sm:$0xf]
    %v254 = vld [vmem:[#allocation7 + $0x9c] sm:$0xf]
    %v255 = vld [vmem:[#allocation7 + $0xa0] sm:$0xf]
    %v256 = vld [vmem:[#allocation7 + $0xa4] sm:$0xf]
    %v257 = vld [vmem:[#allocation7 + $0xa8] sm:$0xf]
    %v258 = vld [vmem:[#allocation7 + $0xac] sm:$0xf]
    %v259 = vld [vmem:[#allocation7 + $0xb0] sm:$0xf]
    %v260 = vld [vmem:[#allocation7 + $0xb4] sm:$0xf]
    %v261 = vld [vmem:[#allocation7 + $0xb8] sm:$0xf]
    %v262 = vld [vmem:[#allocation7 + $0xbc] sm:$0xf]
    %v311 = vunpack.c.l.b16 %v215
    %v312 = vunpack.c.l.b16 %v216
    %v313 = vunpack.c.l.b16 %v217
    %v314 = vunpack.c.l.b16 %v218
    %v315 = vunpack.c.l.b16 %v219
    %v316 = vunpack.c.l.b16 %v220
    %v317 = vunpack.c.l.b16 %v221
    %v318 = vunpack.c.l.b16 %v222
    %v319 = vunpack.c.l.b16 %v223
    %v320 = vunpack.c.l.b16 %v224
    %v321 = vunpack.c.l.b16 %v225
    %v322 = vunpack.c.l.b16 %v226
    %v323 = vunpack.c.l.b16 %v227
    %v324 = vunpack.c.l.b16 %v228
    %v325 = vunpack.c.l.b16 %v229
    %v326 = vunpack.c.l.b16 %v230
    %v327 = vunpack.c.l.b16 %v231
    %v328 = vunpack.c.l.b16 %v232
    %v329 = vunpack.c.l.b16 %v233
    %v330 = vunpack.c.l.b16 %v234
    %v331 = vunpack.c.l.b16 %v235
    %v332 = vunpack.c.l.b16 %v236
    %v333 = vunpack.c.l.b16 %v237
    %v334 = vunpack.c.l.b16 %v238
    %v335 = vunpack.c.l.b16 %v239
    %v336 = vunpack.c.l.b16 %v240
    %v337 = vunpack.c.l.b16 %v241
    %v338 = vunpack.c.l.b16 %v242
    %v339 = vunpack.c.l.b16 %v243
    %v340 = vunpack.c.l.b16 %v244
    %v341 = vunpack.c.l.b16 %v245
    %v342 = vunpack.c.l.b16 %v246
    %v343 = vunpack.c.l.b16 %v247
    %v344 = vunpack.c.l.b16 %v248
    %v345 = vunpack.c.l.b16 %v249
    %v346 = vunpack.c.l.b16 %v250
    %v347 = vunpack.c.l.b16 %v251
    %v348 = vunpack.c.l.b16 %v252
    %v349 = vunpack.c.l.b16 %v253
    %v350 = vunpack.c.l.b16 %v254
    %v351 = vunpack.c.l.b16 %v255
    %v352 = vunpack.c.l.b16 %v256
    %v353 = vunpack.c.l.b16 %v257
    %v354 = vunpack.c.l.b16 %v258
    %v355 = vunpack.c.l.b16 %v259
    %v356 = vunpack.c.l.b16 %v260
    %v357 = vunpack.c.l.b16 %v261
    %v358 = vunpack.c.l.b16 %v262
    %v359 = vpack.c.b16 %v312, %v311
    %v360 = vpack.c.b16 %v314, %v313
    %v361 = vpack.c.b16 %v316, %v315
    %v362 = vpack.c.b16 %v318, %v317
    %v363 = vpack.c.b16 %v320, %v319
    %v364 = vpack.c.b16 %v322, %v321
    %v365 = vpack.c.b16 %v324, %v323
    %v366 = vpack.c.b16 %v326, %v325
    %v367 = vpack.c.b16 %v328, %v327
    %v368 = vpack.c.b16 %v330, %v329
    %v369 = vpack.c.b16 %v332, %v331
    %v370 = vpack.c.b16 %v334, %v333
    %v371 = vpack.c.b16 %v336, %v335
    %v372 = vpack.c.b16 %v338, %v337
    %v373 = vpack.c.b16 %v340, %v339
    %v374 = vpack.c.b16 %v342, %v341
    %v375 = vpack.c.b16 %v344, %v343
    %v376 = vpack.c.b16 %v346, %v345
    %v377 = vpack.c.b16 %v348, %v347
    %v378 = vpack.c.b16 %v350, %v349
    %v379 = vpack.c.b16 %v352, %v351
    %v380 = vpack.c.b16 %v354, %v353
    %v381 = vpack.c.b16 %v356, %v355
    %v382 = vpack.c.b16 %v358, %v357
    %407 = vmatpush.bf16.msra.mxu0 %v366
    %408 = vmatpush.bf16.msra.mxu0 %v365
    %409 = vmatpush.bf16.msra.mxu0 %v364
    %410 = vmatpush.bf16.msra.mxu0 %v363
    %411 = vmatpush.bf16.msra.mxu0 %v362
    %412 = vmatpush.bf16.msra.mxu0 %v361
    %413 = vmatpush.bf16.msra.mxu0 %v360
    %414 = vmatpush.bf16.msra.mxu0 %v359
    %415 = vmatmul.bf16.gmra.mxu0 %v205
    %v416 = vpop.f32.mrf.mxu0
    %v417 = vadd.f32 0.0, %v416
    %v418 = vpop.f32.mrf.mxu0
    %v419 = vadd.f32 0.0, %v418
    %420 = vdwg.mxu0
    %421 = vmatpush.bf16.msra.mxu0 %v374
    %422 = vmatpush.bf16.msra.mxu0 %v373
    %423 = vmatpush.bf16.msra.mxu0 %v372
    %424 = vmatpush.bf16.msra.mxu0 %v371
    %425 = vmatpush.bf16.msra.mxu0 %v370
    %426 = vmatpush.bf16.msra.mxu0 %v369
    %427 = vmatpush.bf16.msra.mxu0 %v368
    %428 = vmatpush.bf16.msra.mxu0 %v367
    %429 = vmatmul.bf16.gmra.mxu0 %v209
    %v430 = vpop.f32.mrf.mxu0
    %v431 = vadd.f32 %v417, %v430
    %v432 = vpop.f32.mrf.mxu0
    %v433 = vadd.f32 %v419, %v432
    %434 = vdwg.mxu0
    %435 = vmatpush.bf16.msra.mxu0 %v382
    %436 = vmatpush.bf16.msra.mxu0 %v381
    %437 = vmatpush.bf16.msra.mxu0 %v380
    %438 = vmatpush.bf16.msra.mxu0 %v379
    %439 = vmatpush.bf16.msra.mxu0 %v378
    %440 = vmatpush.bf16.msra.mxu0 %v377
    %441 = vmatpush.bf16.msra.mxu0 %v376
    %442 = vmatpush.bf16.msra.mxu0 %v375
    %443 = vmatmul.bf16.gmra.mxu0 %v213
    %v444 = vpop.f32.mrf.mxu0
    %v445 = vadd.f32 %v431, %v444
    %v446 = vpop.f32.mrf.mxu0
    %v447 = vadd.f32 %v433, %v446
    %448 = vdwg.mxu0
    %v449 = vadd.f32 %v445, %v447
    %v450 = vrot.slane %v449, 4
    %v451 = vadd.f32 %v449, %v450
    %v452 = vrot.slane %v451, 2
    %v453 = vadd.f32 %v451, %v452
    %v454 = vrot.slane %v453, 1
    %v455 = vadd.f32 %v453, %v454
    %v456 = vld [vmem:[#allocation10] sm:$0xff]
    %v457 = vld [vmem:[#allocation10 + $0x8] sm:$0xff]
    %v458 = vld [vmem:[#allocation10 + $0x10] sm:$0xff]
    %v459 = vld [vmem:[#allocation10 + $0x18] sm:$0xff]
    %v460 = vld [vmem:[#allocation10 + $0x20] sm:$0xff]
    %v461 = vld [vmem:[#allocation10 + $0x28] sm:$0xff]
    %v462 = vld [vmem:[#allocation10 + $0x30] sm:$0xff]
    %v463 = vld [vmem:[#allocation10 + $0x38] sm:$0xff]
    %v464 = vld [vmem:[#allocation10 + $0x40] sm:$0xff]
    %v465 = vld [vmem:[#allocation10 + $0x48] sm:$0xff]
    %v466 = vld [vmem:[#allocation10 + $0x50] sm:$0xff]
    %v467 = vld [vmem:[#allocation10 + $0x58] sm:$0xff]
    %v468 = vld [vmem:[#allocation10 + $0x60] sm:$0xff]
    %v469 = vld [vmem:[#allocation10 + $0x68] sm:$0xff]
    %v470 = vld [vmem:[#allocation10 + $0x70] sm:$0xff]
    %v471 = vld [vmem:[#allocation10 + $0x78] sm:$0xff]
    %472 = vmatpush.msra.mxu0 %v471
    %473 = vmatpush.msra.mxu0 %v470
    %474 = vmatpush.msra.mxu0 %v469
    %475 = vmatpush.msra.mxu0 %v468
    %476 = vmatpush.msra.mxu0 %v467
    %477 = vmatpush.msra.mxu0 %v466
    %478 = vmatpush.msra.mxu0 %v465
    %479 = vmatpush.msra.mxu0 %v464
    %480 = vmatpush.msra.mxu0 %v463
    %481 = vmatpush.msra.mxu0 %v462
    %482 = vmatpush.msra.mxu0 %v461
    %483 = vmatpush.msra.mxu0 %v460
    %484 = vmatpush.msra.mxu0 %v459
    %485 = vmatpush.msra.mxu0 %v458
    %486 = vmatpush.msra.mxu0 %v457
    %487 = vmatpush.msra.mxu0 %v456
    %488 = vmatmul.f32.gmra.mxu0 %v455
    %v489 = vpop.f32.mrf.mxu0
    %v490 = vadd.f32 0.0, %v489
    %491 = vdwg.mxu0
    %v492 = vmul.f32 %v490, 0.001953125
    %v493 = vperm.slane %v492, 0
    %v494 = vsub.f32 %v445, %v493
    %v495 = vsub.f32 %v447, %v493
    %v496 = vmul.f32 %v494, %v494
    %v497 = vmul.f32 %v495, %v495
    %v498 = vadd.f32 %v496, %v497
    %v499 = vrot.slane %v498, 4
    %v500 = vadd.f32 %v498, %v499
    %v501 = vrot.slane %v500, 2
    %v502 = vadd.f32 %v500, %v501
    %v503 = vrot.slane %v502, 1
    %v504 = vadd.f32 %v502, %v503
    %505 = vmatpush.msra.mxu0 %v471
    %506 = vmatpush.msra.mxu0 %v470
    %507 = vmatpush.msra.mxu0 %v469
    %508 = vmatpush.msra.mxu0 %v468
    %509 = vmatpush.msra.mxu0 %v467
    %510 = vmatpush.msra.mxu0 %v466
    %511 = vmatpush.msra.mxu0 %v465
    %512 = vmatpush.msra.mxu0 %v464
    %513 = vmatpush.msra.mxu0 %v463
    %514 = vmatpush.msra.mxu0 %v462
    %515 = vmatpush.msra.mxu0 %v461
    %516 = vmatpush.msra.mxu0 %v460
    %517 = vmatpush.msra.mxu0 %v459
    %518 = vmatpush.msra.mxu0 %v458
    %519 = vmatpush.msra.mxu0 %v457
    %520 = vmatpush.msra.mxu0 %v456
    %521 = vmatmul.f32.gmra.mxu0 %v504
    %v522 = vpop.f32.mrf.mxu0
    %v523 = vadd.f32 0.0, %v522
    %524 = vdwg.mxu0
    %v525 = vmul.f32 %v523, 0.001953125
    %v526 = vld [vmem:[%s3] sm:$0x1]
    %v527 = vadd.f32 %v525, 1e-05
    %v528 = vrsqrt.pop %v527
    %v529 = vmul.f32 %v528, %v527
    %v530 = vmul.f32 %v529, %v528
    %v531 = vmul.f32 0.5, %v530
    %v532 = vsub.f32 1.5, %v531
    %v533 = vmul.f32 %v528, %v532
    %vm534 = vweird.f32 %v527
    %vm535 = vweird.f32 %v528
    %vm536 = vmor %vm534, %vm535
    %v537 = vsel %vm536, %v528, %v533
    %v538 = vmul.f32 %v526, %v537
    %v540 = vperm.slane %v538, 0
    %v542 = vmul.f32 %v494, %v540
    %v543 = vmul.f32 %v495, %v540
    %v544 = vld [vmem:[%s4] sm:$0x1]
    %v546 = vperm.slane %v544, 0
    %v548 = vadd.f32 %v542, %v546
    %v549 = vadd.f32 %v543, %v546
    %v550 = vmax.f32 %v548, 0.0
    %v551 = vmax.f32 %v549, 0.0
    %v552 = vld [vmem:[#allocation3] sm:$0x1]
    %v553 = vsel %vm98, 0, %v552
    %554 = vst [vmem:[#allocation3] sm:$0x1] %v553
    %v555 = vld [vmem:[#allocation3 + $0x8] sm:$0x1]
    %v556 = vsel %vm98, 0, %v555
    %557 = vst [vmem:[#allocation3 + $0x8] sm:$0x1] %v556
    %v558 = vld [vmem:[#allocation3 + $0x4] sm:$0x1]
    %v559 = vsel %vm106, 0, %v558
    %560 = vst [vmem:[#allocation3 + $0x4] sm:$0x1] %v559
    %v561 = vld [vmem:[#allocation3 + $0xc] sm:$0x1]
    %v562 = vsel %vm106, 0, %v561
    %563 = vst [vmem:[#allocation3 + $0xc] sm:$0x1] %v562
    %v564 = vpack.c.bf16 %v550, %v550
    %v565 = vpack.c.bf16 %v551, %v551
    %v567 = vshrl.u32 %v564, 16
    %v569 = vrot.slane %v567, 7
    %v570 = vshll.u32 %v564, 16
    %v572 = vor.u32 %v569, %v570
    %v573 = vrot.slane %v569, 4
    %v575 = vshrl.u32 %v565, 16
    %v577 = vrot.slane %v575, 7
    %v578 = vshll.u32 %v565, 16
    %v580 = vor.u32 %v577, %v578
    %v581 = vrot.slane %v577, 4
    %v586 = vld [vmem:[#allocation3] sm:$0xf]
    %v587 = vsel %vm136, %v572, %v586
    %588 = vst [vmem:[#allocation3] sm:$0xf] %v587
    %v589 = vld [vmem:[#allocation3 + $0x4] sm:$0x1]
    %v590 = vsel %vm98, %v573, %v589
    %591 = vst [vmem:[#allocation3 + $0x4] sm:$0x1] %v590
    %v592 = vld [vmem:[#allocation3 + $0x8] sm:$0xf]
    %v593 = vsel %vm136, %v580, %v592
    %594 = vst [vmem:[#allocation3 + $0x8] sm:$0xf] %v593
    %v595 = vld [vmem:[#allocation3 + $0xc] sm:$0x1]
    %v596 = vsel %vm98, %v581, %v595
    %597 = vst [vmem:[#allocation3 + $0xc] sm:$0x1] %v596
    %v598 = vld [vmem:[#allocation3] sm:$0xf]
    %v599 = vld [vmem:[#allocation3 + $0x8] sm:$0xf]
    %v600 = vld [vmem:[#allocation3 + $0x4] sm:$0x1]
    %v601 = vld [vmem:[#allocation3 + $0xc] sm:$0x1]
    %v603 = vshrl.u32 %v598, 16
    %v605 = vrot.slane %v603, 4
    %v606 = vshll.u32 %v598, 16
    %v608 = vrot.slane %v606, 5
    %v609 = vor.u32 %v605, %v608
    %v610 = vrot.slane %v609, 4
    %v612 = vshll.u32 %v600, 16
    %v614 = vrot.slane %v612, 5
    %v615 = vsel %vm155, %v610, %v614
    %v617 = vshrl.u32 %v599, 16
    %v619 = vrot.slane %v617, 4
    %v620 = vshll.u32 %v599, 16
    %v622 = vrot.slane %v620, 5
    %v623 = vor.u32 %v619, %v622
    %v624 = vrot.slane %v623, 4
    %v626 = vshll.u32 %v601, 16
    %v628 = vrot.slane %v626, 5
    %v629 = vsel %vm155, %v624, %v628
    %v630 = vld [vmem:[#allocation3] sm:$0xe]
    %v631 = vld [vmem:[#allocation3 + $0x8] sm:$0xe]
    %v636 = vrot.slane %v630, 5
    %v637 = vrot.slane %v636, 4
    %v638 = vrot.slane %v600, 5
    %v639 = vsel %vm192, %v637, %v638
    %v640 = vrot.slane %v631, 5
    %v641 = vrot.slane %v640, 4
    %v642 = vrot.slane %v601, 5
    %v643 = vsel %vm192, %v641, %v642
    %v646 = vunpack.c.l.b16 %v598
    %v647 = vunpack.c.l.b16 %v599
    %v648 = vpack.c.b16 %v647, %v646
    %v650 = vunpack.c.l.b16 %v615
    %v651 = vunpack.c.l.b16 %v629
    %v652 = vpack.c.b16 %v651, %v650
    %v654 = vunpack.c.l.b16 %v639
    %v655 = vunpack.c.l.b16 %v643
    %v656 = vpack.c.b16 %v655, %v654
    %v658 = vld [vmem:[#allocation9] sm:$0xf]
    %v659 = vld [vmem:[#allocation9 + $0x4] sm:$0xf]
    %v660 = vld [vmem:[#allocation9 + $0x8] sm:$0xf]
    %v661 = vld [vmem:[#allocation9 + $0xc] sm:$0xf]
    %v662 = vld [vmem:[#allocation9 + $0x10] sm:$0xf]
    %v663 = vld [vmem:[#allocation9 + $0x14] sm:$0xf]
    %v664 = vld [vmem:[#allocation9 + $0x18] sm:$0xf]
    %v665 = vld [vmem:[#allocation9 + $0x1c] sm:$0xf]
    %v666 = vld [vmem:[#allocation9 + $0x20] sm:$0xf]
    %v667 = vld [vmem:[#allocation9 + $0x24] sm:$0xf]
    %v668 = vld [vmem:[#allocation9 + $0x28] sm:$0xf]
    %v669 = vld [vmem:[#allocation9 + $0x2c] sm:$0xf]
    %v670 = vld [vmem:[#allocation9 + $0x30] sm:$0xf]
    %v671 = vld [vmem:[#allocation9 + $0x34] sm:$0xf]
    %v672 = vld [vmem:[#allocation9 + $0x38] sm:$0xf]
    %v673 = vld [vmem:[#allocation9 + $0x3c] sm:$0xf]
    %v674 = vld [vmem:[#allocation9 + $0x40] sm:$0xf]
    %v675 = vld [vmem:[#allocation9 + $0x44] sm:$0xf]
    %v676 = vld [vmem:[#allocation9 + $0x48] sm:$0xf]
    %v677 = vld [vmem:[#allocation9 + $0x4c] sm:$0xf]
    %v678 = vld [vmem:[#allocation9 + $0x50] sm:$0xf]
    %v679 = vld [vmem:[#allocation9 + $0x54] sm:$0xf]
    %v680 = vld [vmem:[#allocation9 + $0x58] sm:$0xf]
    %v681 = vld [vmem:[#allocation9 + $0x5c] sm:$0xf]
    %v682 = vld [vmem:[#allocation9 + $0x60] sm:$0xf]
    %v683 = vld [vmem:[#allocation9 + $0x64] sm:$0xf]
    %v684 = vld [vmem:[#allocation9 + $0x68] sm:$0xf]
    %v685 = vld [vmem:[#allocation9 + $0x6c] sm:$0xf]
    %v686 = vld [vmem:[#allocation9 + $0x70] sm:$0xf]
    %v687 = vld [vmem:[#allocation9 + $0x74] sm:$0xf]
    %v688 = vld [vmem:[#allocation9 + $0x78] sm:$0xf]
    %v689 = vld [vmem:[#allocation9 + $0x7c] sm:$0xf]
    %v690 = vld [vmem:[#allocation9 + $0x80] sm:$0xf]
    %v691 = vld [vmem:[#allocation9 + $0x84] sm:$0xf]
    %v692 = vld [vmem:[#allocation9 + $0x88] sm:$0xf]
    %v693 = vld [vmem:[#allocation9 + $0x8c] sm:$0xf]
    %v694 = vld [vmem:[#allocation9 + $0x90] sm:$0xf]
    %v695 = vld [vmem:[#allocation9 + $0x94] sm:$0xf]
    %v696 = vld [vmem:[#allocation9 + $0x98] sm:$0xf]
    %v697 = vld [vmem:[#allocation9 + $0x9c] sm:$0xf]
    %v698 = vld [vmem:[#allocation9 + $0xa0] sm:$0xf]
    %v699 = vld [vmem:[#allocation9 + $0xa4] sm:$0xf]
    %v700 = vld [vmem:[#allocation9 + $0xa8] sm:$0xf]
    %v701 = vld [vmem:[#allocation9 + $0xac] sm:$0xf]
    %v702 = vld [vmem:[#allocation9 + $0xb0] sm:$0xf]
    %v703 = vld [vmem:[#allocation9 + $0xb4] sm:$0xf]
    %v704 = vld [vmem:[#allocation9 + $0xb8] sm:$0xf]
    %v705 = vld [vmem:[#allocation9 + $0xbc] sm:$0xf]
    %v754 = vunpack.c.l.b16 %v658
    %v755 = vunpack.c.l.b16 %v659
    %v756 = vunpack.c.l.b16 %v660
    %v757 = vunpack.c.l.b16 %v661
    %v758 = vunpack.c.l.b16 %v662
    %v759 = vunpack.c.l.b16 %v663
    %v760 = vunpack.c.l.b16 %v664
    %v761 = vunpack.c.l.b16 %v665
    %v762 = vunpack.c.l.b16 %v666
    %v763 = vunpack.c.l.b16 %v667
    %v764 = vunpack.c.l.b16 %v668
    %v765 = vunpack.c.l.b16 %v669
    %v766 = vunpack.c.l.b16 %v670
    %v767 = vunpack.c.l.b16 %v671
    %v768 = vunpack.c.l.b16 %v672
    %v769 = vunpack.c.l.b16 %v673
    %v770 = vunpack.c.l.b16 %v674
    %v771 = vunpack.c.l.b16 %v675
    %v772 = vunpack.c.l.b16 %v676
    %v773 = vunpack.c.l.b16 %v677
    %v774 = vunpack.c.l.b16 %v678
    %v775 = vunpack.c.l.b16 %v679
    %v776 = vunpack.c.l.b16 %v680
    %v777 = vunpack.c.l.b16 %v681
    %v778 = vunpack.c.l.b16 %v682
    %v779 = vunpack.c.l.b16 %v683
    %v780 = vunpack.c.l.b16 %v684
    %v781 = vunpack.c.l.b16 %v685
    %v782 = vunpack.c.l.b16 %v686
    %v783 = vunpack.c.l.b16 %v687
    %v784 = vunpack.c.l.b16 %v688
    %v785 = vunpack.c.l.b16 %v689
    %v786 = vunpack.c.l.b16 %v690
    %v787 = vunpack.c.l.b16 %v691
    %v788 = vunpack.c.l.b16 %v692
    %v789 = vunpack.c.l.b16 %v693
    %v790 = vunpack.c.l.b16 %v694
    %v791 = vunpack.c.l.b16 %v695
    %v792 = vunpack.c.l.b16 %v696
    %v793 = vunpack.c.l.b16 %v697
    %v794 = vunpack.c.l.b16 %v698
    %v795 = vunpack.c.l.b16 %v699
    %v796 = vunpack.c.l.b16 %v700
    %v797 = vunpack.c.l.b16 %v701
    %v798 = vunpack.c.l.b16 %v702
    %v799 = vunpack.c.l.b16 %v703
    %v800 = vunpack.c.l.b16 %v704
    %v801 = vunpack.c.l.b16 %v705
    %v802 = vpack.c.b16 %v755, %v754
    %v803 = vpack.c.b16 %v757, %v756
    %v804 = vpack.c.b16 %v759, %v758
    %v805 = vpack.c.b16 %v761, %v760
    %v806 = vpack.c.b16 %v763, %v762
    %v807 = vpack.c.b16 %v765, %v764
    %v808 = vpack.c.b16 %v767, %v766
    %v809 = vpack.c.b16 %v769, %v768
    %v810 = vpack.c.b16 %v771, %v770
    %v811 = vpack.c.b16 %v773, %v772
    %v812 = vpack.c.b16 %v775, %v774
    %v813 = vpack.c.b16 %v777, %v776
    %v814 = vpack.c.b16 %v779, %v778
    %v815 = vpack.c.b16 %v781, %v780
    %v816 = vpack.c.b16 %v783, %v782
    %v817 = vpack.c.b16 %v785, %v784
    %v818 = vpack.c.b16 %v787, %v786
    %v819 = vpack.c.b16 %v789, %v788
    %v820 = vpack.c.b16 %v791, %v790
    %v821 = vpack.c.b16 %v793, %v792
    %v822 = vpack.c.b16 %v795, %v794
    %v823 = vpack.c.b16 %v797, %v796
    %v824 = vpack.c.b16 %v799, %v798
    %v825 = vpack.c.b16 %v801, %v800
    %850 = vmatpush.bf16.msra.mxu0 %v809
    %851 = vmatpush.bf16.msra.mxu0 %v808
    %852 = vmatpush.bf16.msra.mxu0 %v807
    %853 = vmatpush.bf16.msra.mxu0 %v806
    %854 = vmatpush.bf16.msra.mxu0 %v805
    %855 = vmatpush.bf16.msra.mxu0 %v804
    %856 = vmatpush.bf16.msra.mxu0 %v803
    %857 = vmatpush.bf16.msra.mxu0 %v802
    %858 = vmatmul.bf16.gmra.mxu0 %v648
    %v859 = vpop.f32.mrf.mxu0
    %v860 = vadd.f32 0.0, %v859
    %v861 = vpop.f32.mrf.mxu0
    %v862 = vadd.f32 0.0, %v861
    %863 = vdwg.mxu0
    %864 = vmatpush.bf16.msra.mxu0 %v817
    %865 = vmatpush.bf16.msra.mxu0 %v816
    %866 = vmatpush.bf16.msra.mxu0 %v815
    %867 = vmatpush.bf16.msra.mxu0 %v814
    %868 = vmatpush.bf16.msra.mxu0 %v813
    %869 = vmatpush.bf16.msra.mxu0 %v812
    %870 = vmatpush.bf16.msra.mxu0 %v811
    %871 = vmatpush.bf16.msra.mxu0 %v810
    %872 = vmatmul.bf16.gmra.mxu0 %v652
    %v873 = vpop.f32.mrf.mxu0
    %v874 = vadd.f32 %v860, %v873
    %v875 = vpop.f32.mrf.mxu0
    %v876 = vadd.f32 %v862, %v875
    %877 = vdwg.mxu0
    %878 = vmatpush.bf16.msra.mxu0 %v825
    %879 = vmatpush.bf16.msra.mxu0 %v824
    %880 = vmatpush.bf16.msra.mxu0 %v823
    %881 = vmatpush.bf16.msra.mxu0 %v822
    %882 = vmatpush.bf16.msra.mxu0 %v821
    %883 = vmatpush.bf16.msra.mxu0 %v820
    %884 = vmatpush.bf16.msra.mxu0 %v819
    %885 = vmatpush.bf16.msra.mxu0 %v818
    %886 = vmatmul.bf16.gmra.mxu0 %v656
    %v887 = vpop.f32.mrf.mxu0
    %v888 = vadd.f32 %v874, %v887
    %v889 = vpop.f32.mrf.mxu0
    %v890 = vadd.f32 %v876, %v889
    %891 = vdwg.mxu0
    %v892 = vadd.f32 %v888, %v890
    %v893 = vrot.slane %v892, 4
    %v894 = vadd.f32 %v892, %v893
    %v895 = vrot.slane %v894, 2
    %v896 = vadd.f32 %v894, %v895
    %v897 = vrot.slane %v896, 1
    %v898 = vadd.f32 %v896, %v897
    %v899 = vld [vmem:[#allocation10] sm:$0xff]
    %v900 = vld [vmem:[#allocation10 + $0x8] sm:$0xff]
    %v901 = vld [vmem:[#allocation10 + $0x10] sm:$0xff]
    %v902 = vld [vmem:[#allocation10 + $0x18] sm:$0xff]
    %v903 = vld [vmem:[#allocation10 + $0x20] sm:$0xff]
    %v904 = vld [vmem:[#allocation10 + $0x28] sm:$0xff]
    %v905 = vld [vmem:[#allocation10 + $0x30] sm:$0xff]
    %v906 = vld [vmem:[#allocation10 + $0x38] sm:$0xff]
    %v907 = vld [vmem:[#allocation10 + $0x40] sm:$0xff]
    %v908 = vld [vmem:[#allocation10 + $0x48] sm:$0xff]
    %v909 = vld [vmem:[#allocation10 + $0x50] sm:$0xff]
    %v910 = vld [vmem:[#allocation10 + $0x58] sm:$0xff]
    %v911 = vld [vmem:[#allocation10 + $0x60] sm:$0xff]
    %v912 = vld [vmem:[#allocation10 + $0x68] sm:$0xff]
    %v913 = vld [vmem:[#allocation10 + $0x70] sm:$0xff]
    %v914 = vld [vmem:[#allocation10 + $0x78] sm:$0xff]
    %915 = vmatpush.msra.mxu0 %v914
    %916 = vmatpush.msra.mxu0 %v913
    %917 = vmatpush.msra.mxu0 %v912
    %918 = vmatpush.msra.mxu0 %v911
    %919 = vmatpush.msra.mxu0 %v910
    %920 = vmatpush.msra.mxu0 %v909
    %921 = vmatpush.msra.mxu0 %v908
    %922 = vmatpush.msra.mxu0 %v907
    %923 = vmatpush.msra.mxu0 %v906
    %924 = vmatpush.msra.mxu0 %v905
    %925 = vmatpush.msra.mxu0 %v904
    %926 = vmatpush.msra.mxu0 %v903
    %927 = vmatpush.msra.mxu0 %v902
    %928 = vmatpush.msra.mxu0 %v901
    %929 = vmatpush.msra.mxu0 %v900
    %930 = vmatpush.msra.mxu0 %v899
    %931 = vmatmul.f32.gmra.mxu0 %v898
    %v932 = vpop.f32.mrf.mxu0
    %v933 = vadd.f32 0.0, %v932
    %934 = vdwg.mxu0
    %v935 = vmul.f32 %v933, 0.001953125
    %v936 = vperm.slane %v935, 0
    %v937 = vsub.f32 %v888, %v936
    %v938 = vsub.f32 %v890, %v936
    %v939 = vmul.f32 %v937, %v937
    %v940 = vmul.f32 %v938, %v938
    %v941 = vadd.f32 %v939, %v940
    %v942 = vrot.slane %v941, 4
    %v943 = vadd.f32 %v941, %v942
    %v944 = vrot.slane %v943, 2
    %v945 = vadd.f32 %v943, %v944
    %v946 = vrot.slane %v945, 1
    %v947 = vadd.f32 %v945, %v946
    %948 = vmatpush.msra.mxu0 %v914
    %949 = vmatpush.msra.mxu0 %v913
    %950 = vmatpush.msra.mxu0 %v912
    %951 = vmatpush.msra.mxu0 %v911
    %952 = vmatpush.msra.mxu0 %v910
    %953 = vmatpush.msra.mxu0 %v909
    %954 = vmatpush.msra.mxu0 %v908
    %955 = vmatpush.msra.mxu0 %v907
    %956 = vmatpush.msra.mxu0 %v906
    %957 = vmatpush.msra.mxu0 %v905
    %958 = vmatpush.msra.mxu0 %v904
    %959 = vmatpush.msra.mxu0 %v903
    %960 = vmatpush.msra.mxu0 %v902
    %961 = vmatpush.msra.mxu0 %v901
    %962 = vmatpush.msra.mxu0 %v900
    %963 = vmatpush.msra.mxu0 %v899
    %964 = vmatmul.f32.gmra.mxu0 %v947
    %v965 = vpop.f32.mrf.mxu0
    %v966 = vadd.f32 0.0, %v965
    %967 = vdwg.mxu0
    %v968 = vmul.f32 %v966, 0.001953125
    %v969 = vld [vmem:[%s5] sm:$0x1]
    %v970 = vadd.f32 %v968, 1e-05
    %v971 = vrsqrt.pop %v970
    %v972 = vmul.f32 %v971, %v970
    %v973 = vmul.f32 %v972, %v971
    %v974 = vmul.f32 0.5, %v973
    %v975 = vsub.f32 1.5, %v974
    %v976 = vmul.f32 %v971, %v975
    %vm977 = vweird.f32 %v970
    %vm978 = vweird.f32 %v971
    %vm979 = vmor %vm977, %vm978
    %v980 = vsel %vm979, %v971, %v976
    %v981 = vmul.f32 %v969, %v980
    %v983 = vperm.slane %v981, 0
    %v985 = vmul.f32 %v937, %v983
    %v986 = vmul.f32 %v938, %v983
    %v987 = vld [vmem:[%s6] sm:$0x1]
    %v989 = vperm.slane %v987, 0
    %v991 = vadd.f32 %v985, %v989
    %v992 = vadd.f32 %v986, %v989
    %v993 = vld [vmem:[#allocation4] sm:$0xff]
    %v994 = vld [vmem:[#allocation4 + $0x8] sm:$0xff]
    %v995 = vadd.f32 %v991, %v993
    %v996 = vadd.f32 %v992, %v994
    %v997 = vmax.f32 %v995, 0.0
    %v998 = vmax.f32 %v996, 0.0
    %999 = vst [vmem:[#allocation12] sm:$0xff] %v997
    %1000 = vst [vmem:[#allocation12 + $0x8] sm:$0xff] %v998
    // Predicated region
    $region50: #{tpu_custom_call.1} parent=1 // pred_check
      _
    $region51: #{tpu_custom_call.1} parent=1 // pred_check_branch
      %1002 = sbr.rel (0) target = $region53
    $region52: #{tpu_custom_call.1} parent=1 // pred_region
      %1004 = vsyncadd [#allocation6], 0
      %s1005 = sshll.u32 [#allocation12], 4
      %s1006 = int_to_ptr.vmem [resolvable:$true] %s1005
      %s1007 = sshll.u32 %s8, 4
      %s1008 = int_to_ptr.hbm [resolvable:$true] %s1007
      %1013 = dma.vmem_to_hbm [thread:$0]  %s1006, 256, %s1008, [#allocation6], 128, 128, 8
    $region53: #{tpu_custom_call.1} parent=1 // pred_fallthru
      _
    // Predicated region
    $region54: #{tpu_custom_call.1} parent=1 // pred_check
      _
    $region55: #{tpu_custom_call.1} parent=1 // pred_check_branch
      %1015 = sbr.rel (0) target = $region57
    $region56: #{tpu_custom_call.1} parent=1 // pred_region
      %1017 = dma.done [#allocation6], 256
    $region57: #{tpu_custom_call.1} parent=1 // pred_fallthru
      _
    %1018 = vsyncpa [#allocation5], 1
    %1019 = vsyncpa [#allocation8], 1
    %1020 = vsyncpa [#allocation11], 1
    %1021 = vsyncpa [#allocation6], 1

</llo_original>
